<compile_context>
chip_gen: v7x
topology: tpu7x:2x2x1
jax: 0.10.0
libtpu: 0.0.40
codegen_flags: <defaults>
</compile_context>

<pallas_src>
import jax
import jax.numpy as jnp
from jax.experimental import pallas as pl
from jax.experimental.pallas import tpu as pltpu

LANE = 128
SUBLANE = 8


def _round_up(n, m):
    return ((n + m - 1) // m) * m


def _choose_batch_tile(batch, tb_max=256):
    """Pick the batch tile TB.

    Prefer the fattest tile (<= tb_max, multiple of 128) to amortize per-step
    grid overhead and fill the 256-tall MXU on v6e/v7x, but keep the
    "parallel" batch grid at >= 2 steps whenever the batch is large enough,
    so v7x's two TensorCores both get work.
    """
    b_sub = _round_up(batch, SUBLANE)
    if b_sub <= LANE:
        return b_sub                       # single small sublane-aligned tile
    tb = min(tb_max, _round_up(b_sub, LANE))
    while tb > LANE and pl.cdiv(b_sub, tb) < 2:
        tb //= 2
    return tb


def _resident_spec(shape):
    """BlockSpec for a VMEM-resident operand (constant block index).

    Single-buffered: the block never changes, so default double-buffering
    would only double its VMEM footprint.
    """
    index_map = lambda i: (0,) * len(shape)
    try:
        return pl.BlockSpec(shape, index_map, pipeline_mode=pl.Buffered(1))
    except TypeError:
        # Older JAX without pipeline_mode on BlockSpec: fall back to default.
        return pl.BlockSpec(shape, index_map)


def dqn_mlp_kernel(x_ref,
                   w0_ref, b0_ref,
                   w1_ref, b1_ref,
                   w2_ref, b2_ref,
                   w3_ref, b3_ref,
                   out_ref):
    # Layer 0: Linear(state_dim -> h0) + ReLU.  bf16 operands, f32 accumulate.
    h = jnp.dot(x_ref[...], w0_ref[...], preferred_element_type=jnp.float32)
    h = jnp.maximum(h + b0_ref[...], 0.0)
    # Layer 1: Linear(h0 -> h1) + ReLU
    h = jnp.dot(h.astype(jnp.bfloat16), w1_ref[...],
                preferred_element_type=jnp.float32)
    h = jnp.maximum(h + b1_ref[...], 0.0)
    # Layer 2: Linear(h1 -> h2) + ReLU
    h = jnp.dot(h.astype(jnp.bfloat16), w2_ref[...],
                preferred_element_type=jnp.float32)
    h = jnp.maximum(h + b2_ref[...], 0.0)
    # Last layer: Linear(h2 -> action_dim_padded), no activation.
    y = jnp.dot(h.astype(jnp.bfloat16), w3_ref[...],
                preferred_element_type=jnp.float32)
    out_ref[...] = (y + b3_ref[...]).astype(out_ref.dtype)


def prepare_params(params):
    """One-time per-model preparation (do NOT call per forward step).

    * Casts weights to bf16 (MXU-native on v6e/v7x, half the DMA bytes).
    * Zero-pads the final layer to 128 output lanes (unmasked lane-dense vst).
    * Reshapes biases to (1, out) f32 so bias+ReLU run on the f32 accumulator.
    """
    action_dim = params[-1][0].shape[1]
    out_pad = _round_up(action_dim, LANE)
    layers = []
    n = len(params)
    for li, (W, b) in enumerate(params):
        if li == n - 1:
            W = jnp.pad(W, ((0, 0), (0, out_pad - action_dim)))
            b = jnp.pad(b, ((0, out_pad - action_dim),))
        layers.append((jnp.asarray(W, jnp.bfloat16),
                       jnp.asarray(b, jnp.float32).reshape(1, -1)))
    return layers, action_dim, out_pad


def dqn_mlp_forward(x, prepared, *, tb=256):
    """x: (B, state_dim) float32.  prepared: output of prepare_params()."""
    layers, action_dim, out_pad = prepared
    B, state_dim = x.shape

    TB = _choose_batch_tile(B, tb)
    B_pad = _round_up(B, TB)
    if B_pad != B:
        x = jnp.pad(x, ((0, B_pad - B), (0, 0)))
    grid = (B_pad // TB,)

    flat_inputs = [x.astype(jnp.bfloat16)]
    in_specs = [pl.BlockSpec((TB, state_dim), lambda i: (i, 0))]

    flops = 0
    weight_bytes = 0
    for (W, b) in layers:
        flat_inputs.append(W)
        in_specs.append(_resident_spec(W.shape))
        flat_inputs.append(b)
        in_specs.append(_resident_spec(b.shape))
        flops += 2 * B_pad * W.shape[0] * W.shape[1]
        weight_bytes += W.size * W.dtype.itemsize + b.size * b.dtype.itemsize
    bytes_accessed = B_pad * state_dim * 2 + weight_bytes + B_pad * out_pad * 4

    # VMEM footprint: double-buffered x/out tiles + single-buffered resident
    # weights/biases + a few f32 activation tiles.  Leave generous headroom;
    # even 4x this is far under v7x's 32 MiB scoped default / 64 MiB per TC.
    footprint = (2 * TB * state_dim * 2          # x tiles (bf16, 2 buffers)
                 + 2 * TB * out_pad * 4          # out tiles (f32, 2 buffers)
                 + weight_bytes                  # resident weights/biases
                 + 4 * TB * LANE * 4)            # f32 activation temporaries
    vmem_limit = int(min(64 << 20, max(8 << 20, 4 * footprint)))

    out = pl.pallas_call(
        dqn_mlp_kernel,
        out_shape=jax.ShapeDtypeStruct((B_pad, out_pad), jnp.float32),
        grid=grid,
        in_specs=in_specs,
        out_specs=pl.BlockSpec((TB, out_pad), lambda i: (i, 0)),
        compiler_params=pltpu.CompilerParams(
            dimension_semantics=("parallel",),
            vmem_limit_bytes=vmem_limit,
        ),
        cost_estimate=pl.CostEstimate(
            flops=flops, transcendentals=0, bytes_accessed=bytes_accessed),
    )(*flat_inputs)

    return out[:B, :action_dim]


def init_params(key, state_dim, action_dim, hidden_dims):
    """Deterministic init mimicking nn.Linear default (uniform +/- 1/sqrt(fan_in))."""
    dims = [state_dim] + list(hidden_dims) + [action_dim]
    params = []
    for i in range(len(dims) - 1):
        fan_in, fan_out = dims[i], dims[i + 1]
        key, kw, kb = jax.random.split(key, 3)
        bound = 1.0 / jnp.sqrt(fan_in)
        W = jax.random.uniform(kw, (fan_in, fan_out), jnp.float32, -bound, bound)
        b = jax.random.uniform(kb, (fan_out,), jnp.float32, -bound, bound)
        params.append((W, b))
    return params


def dqn_mlp_ref(x, params):
    """Pure-JAX reference emulating bf16 operands with f32 accumulation.

    NOTE: matches an f32 torch DQNMLP only to ~1e-2 relative because operands
    are bf16; keep x/W in f32 end-to-end if exact Q-value parity is required.
    """
    def bdot(a, w):
        return jnp.dot(a.astype(jnp.bfloat16).astype(jnp.float32),
                       w.astype(jnp.bfloat16).astype(jnp.float32))
    h = x
    for (W, b) in params[:-1]:
        h = jnp.maximum(bdot(h, W) + b, 0.0)
    W, b = params[-1]
    return bdot(h, W) + b


if __name__ == "__main__":
    key = jax.random.PRNGKey(0)
    # Small but grid-exercising: 256 rows -> two TB=128 batch tiles
    # (keeps the "parallel" grid at 2 steps for v7x's two TensorCores).
    batch, state_dim, action_dim = 256, 32, 8
    hidden_dims = [128, 128, 128]

    key, kx = jax.random.split(key)
    x = jax.random.normal(kx, (batch, state_dim), dtype=jnp.float32)
    params = init_params(key, state_dim, action_dim, hidden_dims)

    # One-time weight preparation (hoisted out of the forward path).
    prepared = prepare_params(params)

    out = dqn_mlp_forward(x, prepared)
    out = jax.block_until_ready(out)

    ref = dqn_mlp_ref(x, params)
    assert out.shape == (batch, action_dim)
    assert jnp.allclose(out, ref, atol=1e-2, rtol=1e-2), (
        float(jnp.max(jnp.abs(out - ref))))

    print("KERNEL_OK")
</pallas_src>

<mosaic_0001>
module attributes {stable_mosaic.version = 11 : i64} {
  func.func @dqn_mlp_kernel(%arg0: i32, %arg1: memref<128x32xbf16, #tpu.memory_space<vmem>>, %arg2: memref<32x128xbf16, #tpu.memory_space<vmem>>, %arg3: memref<1x128xf32, #tpu.memory_space<vmem>>, %arg4: memref<128x128xbf16, #tpu.memory_space<vmem>>, %arg5: memref<1x128xf32, #tpu.memory_space<vmem>>, %arg6: memref<128x128xbf16, #tpu.memory_space<vmem>>, %arg7: memref<1x128xf32, #tpu.memory_space<vmem>>, %arg8: memref<128x128xbf16, #tpu.memory_space<vmem>>, %arg9: memref<1x128xf32, #tpu.memory_space<vmem>>, %arg10: memref<128x128xf32, #tpu.memory_space<vmem>>) attributes {dimension_semantics = [#tpu.dimension_semantics<parallel>], iteration_bounds = array<i64: 2>, scalar_prefetch = 0 : i64, scratch_operands = 0 : i64, tpu.core_type = #tpu.core_type<tc>, window_params = [{transform_indices = @transform_0, window_bounds = array<i64: 128, 32>}, {pipeline_mode = #tpu.pipeline_mode<synchronous>, transform_indices = @transform_1, window_bounds = array<i64: 32, 128>}, {pipeline_mode = #tpu.pipeline_mode<synchronous>, transform_indices = @transform_2, window_bounds = array<i64: 1, 128>}, {pipeline_mode = #tpu.pipeline_mode<synchronous>, transform_indices = @transform_3, window_bounds = array<i64: 128, 128>}, {pipeline_mode = #tpu.pipeline_mode<synchronous>, transform_indices = @transform_4, window_bounds = array<i64: 1, 128>}, {pipeline_mode = #tpu.pipeline_mode<synchronous>, transform_indices = @transform_5, window_bounds = array<i64: 128, 128>}, {pipeline_mode = #tpu.pipeline_mode<synchronous>, transform_indices = @transform_6, window_bounds = array<i64: 1, 128>}, {pipeline_mode = #tpu.pipeline_mode<synchronous>, transform_indices = @transform_7, window_bounds = array<i64: 128, 128>}, {pipeline_mode = #tpu.pipeline_mode<synchronous>, transform_indices = @transform_8, window_bounds = array<i64: 1, 128>}, {transform_indices = @transform_9, window_bounds = array<i64: 128, 128>}]} {
    %c0 = arith.constant 0 : index
    %c0_0 = arith.constant 0 : index
    %0 = vector.load %arg1[%c0, %c0_0] : memref<128x32xbf16, #tpu.memory_space<vmem>>, vector<128x32xbf16>
    %c0_1 = arith.constant 0 : index
    %c0_2 = arith.constant 0 : index
    %1 = vector.load %arg2[%c0_1, %c0_2] : memref<32x128xbf16, #tpu.memory_space<vmem>>, vector<32x128xbf16>
    %cst = arith.constant dense<0.000000e+00> : vector<128x128xf32>
    %2 = tpu.matmul %0, %1, %cst {dimension_numbers = #tpu.dot_dimension_numbers<[1], [0], [0], [1], [0, 0, 1, 1], [], []>} : vector<128x32xbf16>, vector<32x128xbf16>, vector<128x128xf32> -> vector<128x128xf32>
    %c0_3 = arith.constant 0 : index
    %c0_4 = arith.constant 0 : index
    %3 = vector.load %arg3[%c0_3, %c0_4] : memref<1x128xf32, #tpu.memory_space<vmem>>, vector<1x128xf32>
    %4 = vector.broadcast %3 : vector<1x128xf32> to vector<128x128xf32>
    %5 = arith.addf %2, %4 : vector<128x128xf32>
    %cst_5 = arith.constant 0.000000e+00 : f32
    %6 = vector.broadcast %cst_5 : f32 to vector<128x128xf32>
    %7 = arith.maximumf %5, %6 : vector<128x128xf32>
    %8 = arith.truncf %7 : vector<128x128xf32> to vector<128x128xbf16>
    %c0_6 = arith.constant 0 : index
    %c0_7 = arith.constant 0 : index
    %9 = vector.load %arg4[%c0_6, %c0_7] : memref<128x128xbf16, #tpu.memory_space<vmem>>, vector<128x128xbf16>
    %cst_8 = arith.constant dense<0.000000e+00> : vector<128x128xf32>
    %10 = tpu.matmul %8, %9, %cst_8 {dimension_numbers = #tpu.dot_dimension_numbers<[1], [0], [0], [1], [0, 0, 1, 1], [], []>} : vector<128x128xbf16>, vector<128x128xbf16>, vector<128x128xf32> -> vector<128x128xf32>
    %c0_9 = arith.constant 0 : index
    %c0_10 = arith.constant 0 : index
    %11 = vector.load %arg5[%c0_9, %c0_10] : memref<1x128xf32, #tpu.memory_space<vmem>>, vector<1x128xf32>
    %12 = vector.broadcast %11 : vector<1x128xf32> to vector<128x128xf32>
    %13 = arith.addf %10, %12 : vector<128x128xf32>
    %cst_11 = arith.constant 0.000000e+00 : f32
    %14 = vector.broadcast %cst_11 : f32 to vector<128x128xf32>
    %15 = arith.maximumf %13, %14 : vector<128x128xf32>
    %16 = arith.truncf %15 : vector<128x128xf32> to vector<128x128xbf16>
    %c0_12 = arith.constant 0 : index
    %c0_13 = arith.constant 0 : index
    %17 = vector.load %arg6[%c0_12, %c0_13] : memref<128x128xbf16, #tpu.memory_space<vmem>>, vector<128x128xbf16>
    %cst_14 = arith.constant dense<0.000000e+00> : vector<128x128xf32>
    %18 = tpu.matmul %16, %17, %cst_14 {dimension_numbers = #tpu.dot_dimension_numbers<[1], [0], [0], [1], [0, 0, 1, 1], [], []>} : vector<128x128xbf16>, vector<128x128xbf16>, vector<128x128xf32> -> vector<128x128xf32>
    %c0_15 = arith.constant 0 : index
    %c0_16 = arith.constant 0 : index
    %19 = vector.load %arg7[%c0_15, %c0_16] : memref<1x128xf32, #tpu.memory_space<vmem>>, vector<1x128xf32>
    %20 = vector.broadcast %19 : vector<1x128xf32> to vector<128x128xf32>
    %21 = arith.addf %18, %20 : vector<128x128xf32>
    %cst_17 = arith.constant 0.000000e+00 : f32
    %22 = vector.broadcast %cst_17 : f32 to vector<128x128xf32>
    %23 = arith.maximumf %21, %22 : vector<128x128xf32>
    %24 = arith.truncf %23 : vector<128x128xf32> to vector<128x128xbf16>
    %c0_18 = arith.constant 0 : index
    %c0_19 = arith.constant 0 : index
    %25 = vector.load %arg8[%c0_18, %c0_19] : memref<128x128xbf16, #tpu.memory_space<vmem>>, vector<128x128xbf16>
    %cst_20 = arith.constant dense<0.000000e+00> : vector<128x128xf32>
    %26 = tpu.matmul %24, %25, %cst_20 {dimension_numbers = #tpu.dot_dimension_numbers<[1], [0], [0], [1], [0, 0, 1, 1], [], []>} : vector<128x128xbf16>, vector<128x128xbf16>, vector<128x128xf32> -> vector<128x128xf32>
    %c0_21 = arith.constant 0 : index
    %c0_22 = arith.constant 0 : index
    %27 = vector.load %arg9[%c0_21, %c0_22] : memref<1x128xf32, #tpu.memory_space<vmem>>, vector<1x128xf32>
    %28 = vector.broadcast %27 : vector<1x128xf32> to vector<128x128xf32>
    %29 = arith.addf %26, %28 : vector<128x128xf32>
    %c0_23 = arith.constant 0 : index
    %c0_24 = arith.constant 0 : index
    %30 = vector.load %arg10[%c0_23, %c0_24] : memref<128x128xf32, #tpu.memory_space<vmem>>, vector<128x128xf32>
    tpu.vector_store %arg10[%c0_23, %c0_24], %29 {strides = array<i32>} : memref<128x128xf32, #tpu.memory_space<vmem>>, vector<128x128xf32>,
    return
  }
  func.func @transform_0(%arg0: i32) -> (i32, i32) {
    %c0_i32 = arith.constant 0 : i32
    %c0_i32_0 = arith.constant 0 : i32
    return %arg0, %c0_i32 : i32, i32
  }
  func.func @transform_1(%arg0: i32) -> (i32, i32) {
    %c0_i32 = arith.constant 0 : i32
    %c0_i32_0 = arith.constant 0 : i32
    %c0_i32_1 = arith.constant 0 : i32
    return %c0_i32, %c0_i32_0 : i32, i32
  }
  func.func @transform_2(%arg0: i32) -> (i32, i32) {
    %c0_i32 = arith.constant 0 : i32
    %c0_i32_0 = arith.constant 0 : i32
    %c0_i32_1 = arith.constant 0 : i32
    return %c0_i32, %c0_i32_0 : i32, i32
  }
  func.func @transform_3(%arg0: i32) -> (i32, i32) {
    %c0_i32 = arith.constant 0 : i32
    %c0_i32_0 = arith.constant 0 : i32
    %c0_i32_1 = arith.constant 0 : i32
    return %c0_i32, %c0_i32_0 : i32, i32
  }
  func.func @transform_4(%arg0: i32) -> (i32, i32) {
    %c0_i32 = arith.constant 0 : i32
    %c0_i32_0 = arith.constant 0 : i32
    %c0_i32_1 = arith.constant 0 : i32
    return %c0_i32, %c0_i32_0 : i32, i32
  }
  func.func @transform_5(%arg0: i32) -> (i32, i32) {
    %c0_i32 = arith.constant 0 : i32
    %c0_i32_0 = arith.constant 0 : i32
    %c0_i32_1 = arith.constant 0 : i32
    return %c0_i32, %c0_i32_0 : i32, i32
  }
  func.func @transform_6(%arg0: i32) -> (i32, i32) {
    %c0_i32 = arith.constant 0 : i32
    %c0_i32_0 = arith.constant 0 : i32
    %c0_i32_1 = arith.constant 0 : i32
    return %c0_i32, %c0_i32_0 : i32, i32
  }
  func.func @transform_7(%arg0: i32) -> (i32, i32) {
    %c0_i32 = arith.constant 0 : i32
    %c0_i32_0 = arith.constant 0 : i32
    %c0_i32_1 = arith.constant 0 : i32
    return %c0_i32, %c0_i32_0 : i32, i32
  }
  func.func @transform_8(%arg0: i32) -> (i32, i32) {
    %c0_i32 = arith.constant 0 : i32
    %c0_i32_0 = arith.constant 0 : i32
    %c0_i32_1 = arith.constant 0 : i32
    return %c0_i32, %c0_i32_0 : i32, i32
  }
  func.func @transform_9(%arg0: i32) -> (i32, i32) {
    %c0_i32 = arith.constant 0 : i32
    %c0_i32_0 = arith.constant 0 : i32
    return %arg0, %c0_i32 : i32, i32
  }
}

</mosaic_0001>

<llo_original>
// kernel: tpu_custom_call.1
$region0: #{tpu_custom_call.1}
  #allocation0 [shape = 'u32[]', space=smem, size = 0x4, offset = 0x4, fixed_abs, tag = 'smem constant byte address 0x4 - core index']
  #allocation1 [shape = 'u32[144,128]{1,0:T(1,128)}', space=vmem, size = 0x12000, scoped, tag = 'internal scratch']
  %s0 = inlined_call_operand.vmem [shape: bf16[256,32], index: 0, kind: input, shape index: {}]
  %s1 = inlined_call_operand.vmem [shape: bf16[32,128], index: 1, kind: input, shape index: {}]
  %s2 = inlined_call_operand.vmem [shape: f32[1,128], index: 2, kind: input, shape index: {}]
  %s3 = inlined_call_operand.vmem [shape: bf16[128,128], index: 3, kind: input, shape index: {}]
  %s4 = inlined_call_operand.vmem [shape: f32[1,128], index: 4, kind: input, shape index: {}]
  %s5 = inlined_call_operand.vmem [shape: bf16[128,128], index: 5, kind: input, shape index: {}]
  %s6 = inlined_call_operand.vmem [shape: f32[1,128], index: 6, kind: input, shape index: {}]
  %s7 = inlined_call_operand.hbm [shape: bf16[128,128], index: 7, kind: input, shape index: {}]
  %s8 = inlined_call_operand.vmem [shape: f32[1,128], index: 8, kind: input, shape index: {}]
  %s9 = inlined_call_operand.hbm [shape: f32[256,128], index: 9, kind: output, shape index: {}]
  %s10 = sld [smem:[#allocation0]]
  $region73: #{tpu_custom_call.1} parent=0
    _
  %s12 = ssub.s32 1, %s10
  %s13 = scalar_select 0, %s12, %s10
  $region1: #{tpu_custom_call.1} parent=0
    #allocation2 [shape = 'u8[32768]{0}', space=vmem, size = 0x8000, scoped, tag = 'input window, operand 7, single buffered']
    #allocation3 [shape = 's32[2]{0}', space=sflag, size = 0x8, scoped, tag = 'scoped memory for tpu_custom_call.1']
    #allocation4 [shape = 's32[2]{0}', space=sflag, size = 0x8, scoped, tag = 'scoped memory for tpu_custom_call.1']
    #allocation5 [shape = 'u8[131072]{0}', space=vmem, size = 0x20000, scoped, tag = 'output window, operand 0']
    %14 = vsyncpa [#allocation3], 0
    %15 = vsyncpa [#allocation4], 0
    %s16 = scalar_lea.sflag [#allocation4], 1
    %17 = vsyncpa %s16, 0
    loop: start=0, step=1, limit=4
    $region2: #{tpu_custom_call.1} parent=1 // loop_pre_header
      _
    $region3: #{tpu_custom_call.1} parent=1 // loop_header
      %s19 = sphi 0, %s23
      %p20 = scmp.ge.s32.totalorder %s19, 4
      %s29 = sphi 0, %s31
      %s32 = sphi 0, %s29
      %s33 = sphi 0, %s32
      %s49 = sphi 0, %s33
      %s53 = sphi 0, %s53
      %s55 = sphi 0, %s53
      %s56 = sphi 0, %s55
      %s70 = sphi 0, %s56
      %s74 = sphi 0, %s74
      %s76 = sphi 0, %s74
      %s77 = sphi 0, %s76
      %s91 = sphi 0, %s77
      %s95 = sphi 0, %s95
      %s97 = sphi 0, %s95
      %s98 = sphi 0, %s97
      %s112 = sphi 0, %s98
      %s116 = sphi 0, %s116
      %s118 = sphi 0, %s116
      %s119 = sphi 0, %s118
      %s133 = sphi 0, %s119
      %s137 = sphi 0, %s137
      %s139 = sphi 0, %s137
      %s140 = sphi 0, %s139
      %s154 = sphi 0, %s140
      %s158 = sphi 0, %s158
      %s160 = sphi 0, %s158
      %s161 = sphi 0, %s160
      %s175 = sphi 0, %s161
      %s179 = sphi 0, %s179
      %s181 = sphi 0, %s179
      %s182 = sphi 0, %s181
      %s196 = sphi 0, %s182
      %s200 = sphi 0, %s200
      %s202 = sphi 0, %s200
      %s203 = sphi 0, %s202
      %s217 = sphi 0, %s203
      %s223 = sphi 0, %s225
      %s226 = sphi 0, %s223
      %s227 = sphi 0, %s226
      %s243 = sphi 0, %s227
    $region4: #{tpu_custom_call.1} parent=1 // loop_header_branch
      %22 = sbr.rel (%p20) target = $region8
    $region5: #{tpu_custom_call.1} parent=1 // loop_body
      %s24 = ssub.s32 %s19, 1
      %s25 = ssub.s32 %s19, 2
      %s26 = sadd.s32 %s19, 1
      %s27 = ssub.s32 %s19, %s26
      %p28 = scmp.eq.s32.totalorder %s27, 0
      %s30 = sadd.s32 %s29, 1
      %s31 = scalar_select %p28, %s29, %s30
      %p34 = pneg %p28
      %p35 = scmp.eq.s32.totalorder %s19, 1
      %p36 = por %p34, %p35
      %p37 = scmp.ne.s32.totalorder %s29, %s32
      %p38 = scmp.eq.s32.totalorder %s19, 0
      %p39 = por %p37, %p38
      %p40 = scmp.ne.s32.totalorder %s29, %s32
      %p41 = scmp.eq.s32.totalorder %s24, 1
      %p42 = por %p40, %p41
      %p43 = scmp.ne.s32.totalorder %s32, %s33
      %p44 = scmp.eq.s32.totalorder %s24, 0
      %p45 = por %p43, %p44
      %p46 = scmp.ne.s32.totalorder %s32, %s33
      %p47 = scmp.eq.s32.totalorder %s25, 1
      %p48 = por %p46, %p47
      %p50 = scmp.ne.s32.totalorder %s33, %s49
      %p51 = scmp.eq.s32.totalorder %s25, 0
      %p52 = por %p50, %p51
      %s54 = sadd.s32 %s53, 1
      %p57 = scmp.eq.s32.totalorder %s19, 1
      %p58 = scmp.ne.s32.totalorder %s53, %s55
      %p59 = scmp.eq.s32.totalorder %s19, 0
      %p60 = por %p58, %p59
      %p61 = scmp.ne.s32.totalorder %s53, %s55
      %p62 = scmp.eq.s32.totalorder %s24, 1
      %p63 = por %p61, %p62
      %p64 = scmp.ne.s32.totalorder %s55, %s56
      %p65 = scmp.eq.s32.totalorder %s24, 0
      %p66 = por %p64, %p65
      %p67 = scmp.ne.s32.totalorder %s55, %s56
      %p68 = scmp.eq.s32.totalorder %s25, 1
      %p69 = por %p67, %p68
      %p71 = scmp.ne.s32.totalorder %s56, %s70
      %p72 = scmp.eq.s32.totalorder %s25, 0
      %p73 = por %p71, %p72
      %s75 = sadd.s32 %s74, 1
      %p78 = scmp.eq.s32.totalorder %s19, 1
      %p79 = scmp.ne.s32.totalorder %s74, %s76
      %p80 = scmp.eq.s32.totalorder %s19, 0
      %p81 = por %p79, %p80
      %p82 = scmp.ne.s32.totalorder %s74, %s76
      %p83 = scmp.eq.s32.totalorder %s24, 1
      %p84 = por %p82, %p83
      %p85 = scmp.ne.s32.totalorder %s76, %s77
      %p86 = scmp.eq.s32.totalorder %s24, 0
      %p87 = por %p85, %p86
      %p88 = scmp.ne.s32.totalorder %s76, %s77
      %p89 = scmp.eq.s32.totalorder %s25, 1
      %p90 = por %p88, %p89
      %p92 = scmp.ne.s32.totalorder %s77, %s91
      %p93 = scmp.eq.s32.totalorder %s25, 0
      %p94 = por %p92, %p93
      %s96 = sadd.s32 %s95, 1
      %p99 = scmp.eq.s32.totalorder %s19, 1
      %p100 = scmp.ne.s32.totalorder %s95, %s97
      %p101 = scmp.eq.s32.totalorder %s19, 0
      %p102 = por %p100, %p101
      %p103 = scmp.ne.s32.totalorder %s95, %s97
      %p104 = scmp.eq.s32.totalorder %s24, 1
      %p105 = por %p103, %p104
      %p106 = scmp.ne.s32.totalorder %s97, %s98
      %p107 = scmp.eq.s32.totalorder %s24, 0
      %p108 = por %p106, %p107
      %p109 = scmp.ne.s32.totalorder %s97, %s98
      %p110 = scmp.eq.s32.totalorder %s25, 1
      %p111 = por %p109, %p110
      %p113 = scmp.ne.s32.totalorder %s98, %s112
      %p114 = scmp.eq.s32.totalorder %s25, 0
      %p115 = por %p113, %p114
      %s117 = sadd.s32 %s116, 1
      %p120 = scmp.eq.s32.totalorder %s19, 1
      %p121 = scmp.ne.s32.totalorder %s116, %s118
      %p122 = scmp.eq.s32.totalorder %s19, 0
      %p123 = por %p121, %p122
      %p124 = scmp.ne.s32.totalorder %s116, %s118
      %p125 = scmp.eq.s32.totalorder %s24, 1
      %p126 = por %p124, %p125
      %p127 = scmp.ne.s32.totalorder %s118, %s119
      %p128 = scmp.eq.s32.totalorder %s24, 0
      %p129 = por %p127, %p128
      %p130 = scmp.ne.s32.totalorder %s118, %s119
      %p131 = scmp.eq.s32.totalorder %s25, 1
      %p132 = por %p130, %p131
      %p134 = scmp.ne.s32.totalorder %s119, %s133
      %p135 = scmp.eq.s32.totalorder %s25, 0
      %p136 = por %p134, %p135
      %s138 = sadd.s32 %s137, 1
      %p141 = scmp.eq.s32.totalorder %s19, 1
      %p142 = scmp.ne.s32.totalorder %s137, %s139
      %p143 = scmp.eq.s32.totalorder %s19, 0
      %p144 = por %p142, %p143
      %p145 = scmp.ne.s32.totalorder %s137, %s139
      %p146 = scmp.eq.s32.totalorder %s24, 1
      %p147 = por %p145, %p146
      %p148 = scmp.ne.s32.totalorder %s139, %s140
      %p149 = scmp.eq.s32.totalorder %s24, 0
      %p150 = por %p148, %p149
      %p151 = scmp.ne.s32.totalorder %s139, %s140
      %p152 = scmp.eq.s32.totalorder %s25, 1
      %p153 = por %p151, %p152
      %p155 = scmp.ne.s32.totalorder %s140, %s154
      %p156 = scmp.eq.s32.totalorder %s25, 0
      %p157 = por %p155, %p156
      %s159 = sadd.s32 %s158, 1
      %p162 = scmp.eq.s32.totalorder %s19, 1
      %p163 = scmp.ne.s32.totalorder %s158, %s160
      %p164 = scmp.eq.s32.totalorder %s19, 0
      %p165 = por %p163, %p164
      %p166 = scmp.ne.s32.totalorder %s158, %s160
      %p167 = scmp.eq.s32.totalorder %s24, 1
      %p168 = por %p166, %p167
      %p169 = scmp.ne.s32.totalorder %s160, %s161
      %p170 = scmp.eq.s32.totalorder %s24, 0
      %p171 = por %p169, %p170
      %p172 = scmp.ne.s32.totalorder %s160, %s161
      %p173 = scmp.eq.s32.totalorder %s25, 1
      %p174 = por %p172, %p173
      %p176 = scmp.ne.s32.totalorder %s161, %s175
      %p177 = scmp.eq.s32.totalorder %s25, 0
      %p178 = por %p176, %p177
      %s180 = sadd.s32 %s179, 1
      %p183 = scmp.eq.s32.totalorder %s19, 1
      %p184 = scmp.ne.s32.totalorder %s179, %s181
      %p185 = scmp.eq.s32.totalorder %s19, 0
      %p186 = por %p184, %p185
      %p187 = scmp.ne.s32.totalorder %s179, %s181
      %p188 = scmp.eq.s32.totalorder %s24, 1
      %p189 = por %p187, %p188
      %p190 = scmp.ne.s32.totalorder %s181, %s182
      %p191 = scmp.eq.s32.totalorder %s24, 0
      %p192 = por %p190, %p191
      %p193 = scmp.ne.s32.totalorder %s181, %s182
      %p194 = scmp.eq.s32.totalorder %s25, 1
      %p195 = por %p193, %p194
      %p197 = scmp.ne.s32.totalorder %s182, %s196
      %p198 = scmp.eq.s32.totalorder %s25, 0
      %p199 = por %p197, %p198
      %s201 = sadd.s32 %s200, 1
      %p204 = scmp.eq.s32.totalorder %s19, 1
      %p205 = scmp.ne.s32.totalorder %s200, %s202
      %p206 = scmp.eq.s32.totalorder %s19, 0
      %p207 = por %p205, %p206
      %p208 = scmp.ne.s32.totalorder %s200, %s202
      %p209 = scmp.eq.s32.totalorder %s24, 1
      %p210 = por %p208, %p209
      %p211 = scmp.ne.s32.totalorder %s202, %s203
      %p212 = scmp.eq.s32.totalorder %s24, 0
      %p213 = por %p211, %p212
      %p214 = scmp.ne.s32.totalorder %s202, %s203
      %p215 = scmp.eq.s32.totalorder %s25, 1
      %p216 = por %p214, %p215
      %p218 = scmp.ne.s32.totalorder %s203, %s217
      %p219 = scmp.eq.s32.totalorder %s25, 0
      %p220 = por %p218, %p219
      %s221 = ssub.s32 %s19, %s26
      %p222 = scmp.eq.s32.totalorder %s221, 0
      %s224 = sadd.s32 %s223, 1
      %s225 = scalar_select %p222, %s223, %s224
      %p228 = pneg %p222
      %p229 = scmp.eq.s32.totalorder %s19, 1
      %p230 = por %p228, %p229
      %p231 = scmp.ne.s32.totalorder %s223, %s226
      %p232 = scmp.eq.s32.totalorder %s19, 0
      %p233 = por %p231, %p232
      %p234 = scmp.ne.s32.totalorder %s223, %s226
      %p235 = scmp.eq.s32.totalorder %s24, 1
      %p236 = por %p234, %p235
      %p237 = scmp.ne.s32.totalorder %s226, %s227
      %p238 = scmp.eq.s32.totalorder %s24, 0
      %p239 = por %p237, %p238
      %p240 = scmp.ne.s32.totalorder %s226, %s227
      %p241 = scmp.eq.s32.totalorder %s25, 1
      %p242 = por %p240, %p241
      %p244 = scmp.ne.s32.totalorder %s227, %s243
      %p245 = scmp.eq.s32.totalorder %s25, 0
      %p246 = por %p244, %p245
      %p247 = scmp.le.s32.totalorder 1, %s19
      %p248 = scmp.lt.s32.totalorder %s19, 3
      %p249 = pnand %p247, %p248
      %p250 = pneg %p249
      // Predicated region
      $region9: #{tpu_custom_call.1} parent=5 // pred_check
        _
      $region10: #{tpu_custom_call.1} parent=5 // pred_check_branch
        %252 = sbr.rel (%p249) target = $region12
      $region11: #{tpu_custom_call.1} parent=5 // pred_region
        %s253 = ssub.s32 %s19, 1
        // Predicated region
        $region13: #{tpu_custom_call.1} parent=11 // pred_check
          %p254 = pneg %p66
        $region14: #{tpu_custom_call.1} parent=11 // pred_check_branch
          %256 = sbr.rel (%p254) target = $region16
        $region15: #{tpu_custom_call.1} parent=11 // pred_region
          _
        $region16: #{tpu_custom_call.1} parent=11 // pred_fallthru
          _
        // Predicated region
        $region17: #{tpu_custom_call.1} parent=11 // pred_check
          %p257 = pneg %p87
        $region18: #{tpu_custom_call.1} parent=11 // pred_check_branch
          %259 = sbr.rel (%p257) target = $region20
        $region19: #{tpu_custom_call.1} parent=11 // pred_region
          _
        $region20: #{tpu_custom_call.1} parent=11 // pred_fallthru
          _
        // Predicated region
        $region21: #{tpu_custom_call.1} parent=11 // pred_check
          %p260 = pneg %p108
        $region22: #{tpu_custom_call.1} parent=11 // pred_check_branch
          %262 = sbr.rel (%p260) target = $region24
        $region23: #{tpu_custom_call.1} parent=11 // pred_region
          _
        $region24: #{tpu_custom_call.1} parent=11 // pred_fallthru
          _
        // Predicated region
        $region25: #{tpu_custom_call.1} parent=11 // pred_check
          %p263 = pneg %p129
        $region26: #{tpu_custom_call.1} parent=11 // pred_check_branch
          %265 = sbr.rel (%p263) target = $region28
        $region27: #{tpu_custom_call.1} parent=11 // pred_region
          _
        $region28: #{tpu_custom_call.1} parent=11 // pred_fallthru
          _
        // Predicated region
        $region29: #{tpu_custom_call.1} parent=11 // pred_check
          %p266 = pneg %p150
        $region30: #{tpu_custom_call.1} parent=11 // pred_check_branch
          %268 = sbr.rel (%p266) target = $region32
        $region31: #{tpu_custom_call.1} parent=11 // pred_region
          _
        $region32: #{tpu_custom_call.1} parent=11 // pred_fallthru
          _
        // Predicated region
        $region33: #{tpu_custom_call.1} parent=11 // pred_check
          %p269 = pneg %p171
        $region34: #{tpu_custom_call.1} parent=11 // pred_check_branch
          %271 = sbr.rel (%p269) target = $region36
        $region35: #{tpu_custom_call.1} parent=11 // pred_region
          _
        $region36: #{tpu_custom_call.1} parent=11 // pred_fallthru
          _
        // Predicated region
        $region37: #{tpu_custom_call.1} parent=11 // pred_check
          %p272 = pneg %p192
        $region38: #{tpu_custom_call.1} parent=11 // pred_check_branch
          %274 = sbr.rel (%p272) target = $region40
        $region39: #{tpu_custom_call.1} parent=11 // pred_region
          %s276 = ssub.s32 1024, 1024
          %277 = vsyncadd [#allocation3], %s276
          %s278 = sshll.u32 [#allocation2], 4
          %s279 = int_to_ptr.vmem [resolvable:$true] %s278
          %284 = dma.hbm_to_vmem [thread:$0]  %s7, 1024, %s279, [#allocation3], 64, 64, 4
        $region40: #{tpu_custom_call.1} parent=11 // pred_fallthru
          _
        // Predicated region
        $region41: #{tpu_custom_call.1} parent=11 // pred_check
          %p285 = pneg %p213
        $region42: #{tpu_custom_call.1} parent=11 // pred_check_branch
          %287 = sbr.rel (%p285) target = $region44
        $region43: #{tpu_custom_call.1} parent=11 // pred_region
          _
        $region44: #{tpu_custom_call.1} parent=11 // pred_fallthru
          _
      $region12: #{tpu_custom_call.1} parent=5 // pred_fallthru
        _
      %p288 = scmp.lt.s32.totalorder %s19, 2
      // Predicated region
      $region45: #{tpu_custom_call.1} parent=5 // pred_check
        %p289 = pneg %p288
      $region46: #{tpu_custom_call.1} parent=5 // pred_check_branch
        %291 = sbr.rel (%p289) target = $region48
      $region47: #{tpu_custom_call.1} parent=5 // pred_region
        // Predicated region
        $region49: #{tpu_custom_call.1} parent=47 // pred_check
          %p292 = pneg %p39
        $region50: #{tpu_custom_call.1} parent=47 // pred_check_branch
          %294 = sbr.rel (%p292) target = $region52
        $region51: #{tpu_custom_call.1} parent=47 // pred_region
          %s295 = smul.u32 16, %s19
          %p296 = scmp.lt.s32.totalorder %s295, 31
          %s297 = scalar_select %p296, %s295, 31
          %s298 = smul.addr %s297, 4
          %s299 = scalar_lea.vmem %s0, %s298
          %s300 = smul.u32 16, %s19
        $region52: #{tpu_custom_call.1} parent=47 // pred_fallthru
          _
      $region48: #{tpu_custom_call.1} parent=5 // pred_fallthru
        _
      %p301 = scmp.le.s32.totalorder 1, %s19
      %p302 = scmp.lt.s32.totalorder %s19, 3
      %p303 = pnand %p301, %p302
      %p304 = pneg %p303
      // Predicated region
      $region53: #{tpu_custom_call.1} parent=5 // pred_check
        _
      $region54: #{tpu_custom_call.1} parent=5 // pred_check_branch
        %306 = sbr.rel (%p303) target = $region56
      $region55: #{tpu_custom_call.1} parent=5 // pred_region
        %s307 = ssub.s32 %s19, 1
        // Predicated region
        $region57: #{tpu_custom_call.1} parent=55 // pred_check
          %p308 = pneg %p192
        $region58: #{tpu_custom_call.1} parent=55 // pred_check_branch
          %310 = sbr.rel (%p308) target = $region60
        $region59: #{tpu_custom_call.1} parent=55 // pred_region
          %311 = dma.done [#allocation3], 1024
        $region60: #{tpu_custom_call.1} parent=55 // pred_fallthru
          _
        %s312 = smul.u32 16, %s24
        %p313 = scmp.lt.s32.totalorder %s312, 31
        %s314 = scalar_select %p313, %s312, 31
        %s315 = smul.addr %s314, 4
        %s316 = scalar_lea.vmem %s0, %s315
        %p317 = pneg %p45
        %p318 = pneg %p42
        %p319 = pneg %p66
        %p320 = pneg %p63
        %p321 = pneg %p87
        %p322 = pneg %p84
        %p323 = pneg %p108
        %p324 = pneg %p105
        %p325 = pneg %p129
        %p326 = pneg %p126
        %p327 = pneg %p150
        %p328 = pneg %p147
        %p329 = pneg %p171
        %p330 = pneg %p168
        %p331 = pneg %p192
        %p332 = pneg %p189
        %p333 = pneg %p213
        %p334 = pneg %p210
        %p335 = pneg %p239
        %p336 = pneg %p236
        %s337 = sand.u32 %s226, 1
        %s338 = scalar_lea.sflag [#allocation4], %s337
        %s339 = sand.u32 %s226, 1
        %s340 = smul.addr %s339, 128
        %s341 = scalar_lea.vmem [#allocation5], %s340
        %s342 = smul.u32 16, %s24
        %p343 = scmp.lt.s32.totalorder %s342, 31
        %s344 = scalar_select %p343, %s342, 31
        %s345 = smul.addr %s344, 4
        %s346 = scalar_lea.vmem %s0, %s345
        %s347 = smul.u32 16, %s24
        %s348 = smul.u32 16, %s24
        %v350 = vld [vmem:[%s346] sm:$0xf]
        %v351 = vld [vmem:[%s346 + $0x4] sm:$0xf]
        %v352 = vld [vmem:[%s346 + $0x8] sm:$0xf]
        %v353 = vld [vmem:[%s346 + $0xc] sm:$0xf]
        %v354 = vld [vmem:[%s346 + $0x10] sm:$0xf]
        %v355 = vld [vmem:[%s346 + $0x14] sm:$0xf]
        %v356 = vld [vmem:[%s346 + $0x18] sm:$0xf]
        %v357 = vld [vmem:[%s346 + $0x1c] sm:$0xf]
        %v358 = vld [vmem:[%s346 + $0x20] sm:$0xf]
        %v359 = vld [vmem:[%s346 + $0x24] sm:$0xf]
        %v360 = vld [vmem:[%s346 + $0x28] sm:$0xf]
        %v361 = vld [vmem:[%s346 + $0x2c] sm:$0xf]
        %v362 = vld [vmem:[%s346 + $0x30] sm:$0xf]
        %v363 = vld [vmem:[%s346 + $0x34] sm:$0xf]
        %v364 = vld [vmem:[%s346 + $0x38] sm:$0xf]
        %v365 = vld [vmem:[%s346 + $0x3c] sm:$0xf]
        %v366 = vld [vmem:[%s1] sm:$0xf]
        %v367 = vld [vmem:[%s1 + $0x4] sm:$0xf]
        %v368 = vld [vmem:[%s1 + $0x8] sm:$0xf]
        %v369 = vld [vmem:[%s1 + $0xc] sm:$0xf]
        %v370 = vld [vmem:[%s2] sm:$0x1]
        %v372 = vlaneseq
        %v373 = vshrl.u32 %v372, 7
        %v374 = vsub.s32 0, %v373
        %v375 = vrot.slane %v370, %v374
        %v393 = vunpack.c.l.b16 %v350
        %v394 = vunpack.c.l.b16 %v351
        %v395 = vunpack.c.l.b16 %v352
        %v396 = vunpack.c.l.b16 %v353
        %v397 = vunpack.c.l.b16 %v354
        %v398 = vunpack.c.l.b16 %v355
        %v399 = vunpack.c.l.b16 %v356
        %v400 = vunpack.c.l.b16 %v357
        %v401 = vunpack.c.l.b16 %v358
        %v402 = vunpack.c.l.b16 %v359
        %v403 = vunpack.c.l.b16 %v360
        %v404 = vunpack.c.l.b16 %v361
        %v405 = vunpack.c.l.b16 %v362
        %v406 = vunpack.c.l.b16 %v363
        %v407 = vunpack.c.l.b16 %v364
        %v408 = vunpack.c.l.b16 %v365
        %v409 = vpack.c.b16 %v394, %v393
        %v410 = vpack.c.b16 %v396, %v395
        %v411 = vpack.c.b16 %v398, %v397
        %v412 = vpack.c.b16 %v400, %v399
        %v413 = vpack.c.b16 %v402, %v401
        %v414 = vpack.c.b16 %v404, %v403
        %v415 = vpack.c.b16 %v406, %v405
        %v416 = vpack.c.b16 %v408, %v407
        %v421 = vunpack.c.l.b16 %v366
        %v422 = vunpack.c.l.b16 %v367
        %v423 = vunpack.c.l.b16 %v368
        %v424 = vunpack.c.l.b16 %v369
        %v425 = vpack.c.b16 %v422, %v421
        %v426 = vpack.c.b16 %v424, %v423
        %vm429 = vcmask 261120
        %v431 = vsel %vm429, %v409, 0
        %v434 = vsel %vm429, %v410, 0
        %v437 = vsel %vm429, %v411, 0
        %v440 = vsel %vm429, %v412, 0
        %v443 = vsel %vm429, %v413, 0
        %v446 = vsel %vm429, %v414, 0
        %v449 = vsel %vm429, %v415, 0
        %v452 = vsel %vm429, %v416, 0
        %454 = vmatprep.subr.bf16.mxu0 0
        %455 = vmatpush1.bf16.msra.mxu0 %v425
        %456 = vmatprep.subr.bf16.mxu0 0
        %457 = vmatpush1.bf16.msra.mxu0 %v426
        %458 = vmatprep.subr.bf16.mxu0 0
        %459 = vmatpush1.bf16.msra.mxu0 0
        %460 = vmatprep.subr.bf16.mxu0 0
        %461 = vmatpush1.bf16.msra.mxu0 0
        %462 = vmatprep.subr.bf16.mxu0 0
        %463 = vmatpush1.bf16.msra.mxu0 0
        %464 = vmatprep.subr.bf16.mxu0 0
        %465 = vmatpush1.bf16.msra.mxu0 0
        %466 = vmatprep.subr.bf16.mxu0 0
        %467 = vmatpush1.bf16.msra.mxu0 0
        %468 = vmatprep.subr.bf16.mxu0 0
        %469 = vmatpush1.bf16.msra.mxu0 0
        %470 = vmatprep.subr.bf16.mxu0 0
        %471 = vmatpush1.bf16.msra.mxu0 0
        %472 = vmatprep.subr.bf16.mxu0 0
        %473 = vmatpush1.bf16.msra.mxu0 0
        %474 = vmatprep.subr.bf16.mxu0 0
        %475 = vmatpush1.bf16.msra.mxu0 0
        %476 = vmatprep.subr.bf16.mxu0 0
        %477 = vmatpush1.bf16.msra.mxu0 0
        %478 = vmatprep.subr.bf16.mxu0 0
        %479 = vmatpush1.bf16.msra.mxu0 0
        %480 = vmatprep.subr.bf16.mxu0 0
        %481 = vmatpush1.bf16.msra.mxu0 0
        %482 = vmatprep.subr.bf16.mxu0 0
        %483 = vmatpush1.bf16.msra.mxu0 0
        %484 = vmatprep.subr.bf16.mxu0 0
        %485 = vmatpush1.bf16.msra.mxu0 0
        %486 = vmatprep.mubr.bf16.mxu0 0
        %487 = vmatmul.mubr.bf16.gmra.mrb[0].mxu0 %v431
        %v488 = vpop.f32.mrb[0].mxu0
        %v489 = vadd.f32 %v375, %v488
        %v490 = vpop.f32.mrb[0].mxu0
        %v491 = vpop.f32.mrb[0].mxu0
        %v492 = vadd.f32 %v375, %v491
        %v493 = vpop.f32.mrb[0].mxu0
        %494 = vmatprep.mubr.bf16.mxu0 0
        %495 = vmatmul.mubr.bf16.gmra.mrb[0].mxu0 %v434
        %v496 = vpop.f32.mrb[0].mxu0
        %v497 = vadd.f32 %v375, %v496
        %v498 = vpop.f32.mrb[0].mxu0
        %v499 = vpop.f32.mrb[0].mxu0
        %v500 = vadd.f32 %v375, %v499
        %v501 = vpop.f32.mrb[0].mxu0
        %502 = vmatprep.mubr.bf16.mxu0 0
        %503 = vmatmul.mubr.bf16.gmra.mrb[0].mxu0 %v437
        %v504 = vpop.f32.mrb[0].mxu0
        %v505 = vadd.f32 %v375, %v504
        %v506 = vpop.f32.mrb[0].mxu0
        %v507 = vpop.f32.mrb[0].mxu0
        %v508 = vadd.f32 %v375, %v507
        %v509 = vpop.f32.mrb[0].mxu0
        %510 = vmatprep.mubr.bf16.mxu0 0
        %511 = vmatmul.mubr.bf16.gmra.mrb[0].mxu0 %v440
        %v512 = vpop.f32.mrb[0].mxu0
        %v513 = vadd.f32 %v375, %v512
        %v514 = vpop.f32.mrb[0].mxu0
        %v515 = vpop.f32.mrb[0].mxu0
        %v516 = vadd.f32 %v375, %v515
        %v517 = vpop.f32.mrb[0].mxu0
        %518 = vmatprep.mubr.bf16.mxu0 0
        %519 = vmatmul.mubr.bf16.gmra.mrb[0].mxu0 %v443
        %v520 = vpop.f32.mrb[0].mxu0
        %v521 = vadd.f32 %v375, %v520
        %v522 = vpop.f32.mrb[0].mxu0
        %v523 = vpop.f32.mrb[0].mxu0
        %v524 = vadd.f32 %v375, %v523
        %v525 = vpop.f32.mrb[0].mxu0
        %526 = vmatprep.mubr.bf16.mxu0 0
        %527 = vmatmul.mubr.bf16.gmra.mrb[0].mxu0 %v446
        %v528 = vpop.f32.mrb[0].mxu0
        %v529 = vadd.f32 %v375, %v528
        %v530 = vpop.f32.mrb[0].mxu0
        %v531 = vpop.f32.mrb[0].mxu0
        %v532 = vadd.f32 %v375, %v531
        %v533 = vpop.f32.mrb[0].mxu0
        %534 = vmatprep.mubr.bf16.mxu0 0
        %535 = vmatmul.mubr.bf16.gmra.mrb[0].mxu0 %v449
        %v536 = vpop.f32.mrb[0].mxu0
        %v537 = vadd.f32 %v375, %v536
        %v538 = vpop.f32.mrb[0].mxu0
        %v539 = vpop.f32.mrb[0].mxu0
        %v540 = vadd.f32 %v375, %v539
        %v541 = vpop.f32.mrb[0].mxu0
        %542 = vmatprep.mubr.bf16.mxu0 0
        %543 = vmatmul.mubr.bf16.gmra.mrb[0].mxu0 %v452
        %v544 = vpop.f32.mrb[0].mxu0
        %v545 = vadd.f32 %v375, %v544
        %v546 = vpop.f32.mrb[0].mxu0
        %v547 = vpop.f32.mrb[0].mxu0
        %v548 = vadd.f32 %v375, %v547
        %v549 = vpop.f32.mrb[0].mxu0
        %550 = vdwg.mxu0
        %v551 = vmax.f32 %v489, 0.0
        %v552 = vmax.f32 %v492, 0.0
        %v553 = vmax.f32 %v497, 0.0
        %v554 = vmax.f32 %v500, 0.0
        %v555 = vmax.f32 %v505, 0.0
        %v556 = vmax.f32 %v508, 0.0
        %v557 = vmax.f32 %v513, 0.0
        %v558 = vmax.f32 %v516, 0.0
        %v559 = vmax.f32 %v521, 0.0
        %v560 = vmax.f32 %v524, 0.0
        %v561 = vmax.f32 %v529, 0.0
        %v562 = vmax.f32 %v532, 0.0
        %v563 = vmax.f32 %v537, 0.0
        %v564 = vmax.f32 %v540, 0.0
        %v565 = vmax.f32 %v545, 0.0
        %v566 = vmax.f32 %v548, 0.0
        %v567 = vpack.c.bf16 %v552, %v551
        %v568 = vpack.c.bf16 %v554, %v553
        %v569 = vpack.c.bf16 %v556, %v555
        %v570 = vpack.c.bf16 %v558, %v557
        %v571 = vpack.c.bf16 %v560, %v559
        %v572 = vpack.c.bf16 %v562, %v561
        %v573 = vpack.c.bf16 %v564, %v563
        %v574 = vpack.c.bf16 %v566, %v565
        %v575 = vld [vmem:[%s3] sm:$0xf]
        %v576 = vld [vmem:[%s3 + $0x4] sm:$0xf]
        %v577 = vld [vmem:[%s3 + $0x8] sm:$0xf]
        %v578 = vld [vmem:[%s3 + $0xc] sm:$0xf]
        %v579 = vld [vmem:[%s3 + $0x10] sm:$0xf]
        %v580 = vld [vmem:[%s3 + $0x14] sm:$0xf]
        %v581 = vld [vmem:[%s3 + $0x18] sm:$0xf]
        %v582 = vld [vmem:[%s3 + $0x1c] sm:$0xf]
        %v583 = vld [vmem:[%s3 + $0x20] sm:$0xf]
        %v584 = vld [vmem:[%s3 + $0x24] sm:$0xf]
        %v585 = vld [vmem:[%s3 + $0x28] sm:$0xf]
        %v586 = vld [vmem:[%s3 + $0x2c] sm:$0xf]
        %v587 = vld [vmem:[%s3 + $0x30] sm:$0xf]
        %v588 = vld [vmem:[%s3 + $0x34] sm:$0xf]
        %v589 = vld [vmem:[%s3 + $0x38] sm:$0xf]
        %v590 = vld [vmem:[%s3 + $0x3c] sm:$0xf]
        %v591 = vld [vmem:[%s4] sm:$0x1]
        %v593 = vlaneseq
        %v594 = vshrl.u32 %v593, 7
        %v595 = vsub.s32 0, %v594
        %v596 = vrot.slane %v591, %v595
        %v614 = vunpack.c.l.b16 %v575
        %v615 = vunpack.c.l.b16 %v576
        %v616 = vunpack.c.l.b16 %v577
        %v617 = vunpack.c.l.b16 %v578
        %v618 = vunpack.c.l.b16 %v579
        %v619 = vunpack.c.l.b16 %v580
        %v620 = vunpack.c.l.b16 %v581
        %v621 = vunpack.c.l.b16 %v582
        %v622 = vunpack.c.l.b16 %v583
        %v623 = vunpack.c.l.b16 %v584
        %v624 = vunpack.c.l.b16 %v585
        %v625 = vunpack.c.l.b16 %v586
        %v626 = vunpack.c.l.b16 %v587
        %v627 = vunpack.c.l.b16 %v588
        %v628 = vunpack.c.l.b16 %v589
        %v629 = vunpack.c.l.b16 %v590
        %v630 = vpack.c.b16 %v615, %v614
        %v631 = vpack.c.b16 %v617, %v616
        %v632 = vpack.c.b16 %v619, %v618
        %v633 = vpack.c.b16 %v621, %v620
        %v634 = vpack.c.b16 %v623, %v622
        %v635 = vpack.c.b16 %v625, %v624
        %v636 = vpack.c.b16 %v627, %v626
        %v637 = vpack.c.b16 %v629, %v628
        %646 = vmatprep.subr.bf16.mxu0 0
        %647 = vmatpush1.bf16.msra.mxu0 %v630
        %648 = vmatprep.subr.bf16.mxu0 0
        %649 = vmatpush1.bf16.msra.mxu0 %v631
        %650 = vmatprep.subr.bf16.mxu0 0
        %651 = vmatpush1.bf16.msra.mxu0 %v632
        %652 = vmatprep.subr.bf16.mxu0 0
        %653 = vmatpush1.bf16.msra.mxu0 %v633
        %654 = vmatprep.subr.bf16.mxu0 0
        %655 = vmatpush1.bf16.msra.mxu0 %v634
        %656 = vmatprep.subr.bf16.mxu0 0
        %657 = vmatpush1.bf16.msra.mxu0 %v635
        %658 = vmatprep.subr.bf16.mxu0 0
        %659 = vmatpush1.bf16.msra.mxu0 %v636
        %660 = vmatprep.subr.bf16.mxu0 0
        %661 = vmatpush1.bf16.msra.mxu0 %v637
        %662 = vmatprep.subr.bf16.mxu0 0
        %663 = vmatpush1.bf16.msra.mxu0 0
        %664 = vmatprep.subr.bf16.mxu0 0
        %665 = vmatpush1.bf16.msra.mxu0 0
        %666 = vmatprep.subr.bf16.mxu0 0
        %667 = vmatpush1.bf16.msra.mxu0 0
        %668 = vmatprep.subr.bf16.mxu0 0
        %669 = vmatpush1.bf16.msra.mxu0 0
        %670 = vmatprep.subr.bf16.mxu0 0
        %671 = vmatpush1.bf16.msra.mxu0 0
        %672 = vmatprep.subr.bf16.mxu0 0
        %673 = vmatpush1.bf16.msra.mxu0 0
        %674 = vmatprep.subr.bf16.mxu0 0
        %675 = vmatpush1.bf16.msra.mxu0 0
        %676 = vmatprep.subr.bf16.mxu0 0
        %677 = vmatpush1.bf16.msra.mxu0 0
        %678 = vmatprep.mubr.bf16.mxu0 0
        %679 = vmatmul.mubr.bf16.gmra.mrb[0].mxu0 %v567
        %v680 = vpop.f32.mrb[0].mxu0
        %v681 = vadd.f32 %v596, %v680
        %v682 = vpop.f32.mrb[0].mxu0
        %v683 = vpop.f32.mrb[0].mxu0
        %v684 = vadd.f32 %v596, %v683
        %v685 = vpop.f32.mrb[0].mxu0
        %686 = vmatprep.mubr.bf16.mxu0 0
        %687 = vmatmul.mubr.bf16.gmra.mrb[0].mxu0 %v568
        %v688 = vpop.f32.mrb[0].mxu0
        %v689 = vadd.f32 %v596, %v688
        %v690 = vpop.f32.mrb[0].mxu0
        %v691 = vpop.f32.mrb[0].mxu0
        %v692 = vadd.f32 %v596, %v691
        %v693 = vpop.f32.mrb[0].mxu0
        %694 = vmatprep.mubr.bf16.mxu0 0
        %695 = vmatmul.mubr.bf16.gmra.mrb[0].mxu0 %v569
        %v696 = vpop.f32.mrb[0].mxu0
        %v697 = vadd.f32 %v596, %v696
        %v698 = vpop.f32.mrb[0].mxu0
        %v699 = vpop.f32.mrb[0].mxu0
        %v700 = vadd.f32 %v596, %v699
        %v701 = vpop.f32.mrb[0].mxu0
        %702 = vmatprep.mubr.bf16.mxu0 0
        %703 = vmatmul.mubr.bf16.gmra.mrb[0].mxu0 %v570
        %v704 = vpop.f32.mrb[0].mxu0
        %v705 = vadd.f32 %v596, %v704
        %v706 = vpop.f32.mrb[0].mxu0
        %v707 = vpop.f32.mrb[0].mxu0
        %v708 = vadd.f32 %v596, %v707
        %v709 = vpop.f32.mrb[0].mxu0
        %710 = vmatprep.mubr.bf16.mxu0 0
        %711 = vmatmul.mubr.bf16.gmra.mrb[0].mxu0 %v571
        %v712 = vpop.f32.mrb[0].mxu0
        %v713 = vadd.f32 %v596, %v712
        %v714 = vpop.f32.mrb[0].mxu0
        %v715 = vpop.f32.mrb[0].mxu0
        %v716 = vadd.f32 %v596, %v715
        %v717 = vpop.f32.mrb[0].mxu0
        %718 = vmatprep.mubr.bf16.mxu0 0
        %719 = vmatmul.mubr.bf16.gmra.mrb[0].mxu0 %v572
        %v720 = vpop.f32.mrb[0].mxu0
        %v721 = vadd.f32 %v596, %v720
        %v722 = vpop.f32.mrb[0].mxu0
        %v723 = vpop.f32.mrb[0].mxu0
        %v724 = vadd.f32 %v596, %v723
        %v725 = vpop.f32.mrb[0].mxu0
        %726 = vmatprep.mubr.bf16.mxu0 0
        %727 = vmatmul.mubr.bf16.gmra.mrb[0].mxu0 %v573
        %v728 = vpop.f32.mrb[0].mxu0
        %v729 = vadd.f32 %v596, %v728
        %v730 = vpop.f32.mrb[0].mxu0
        %v731 = vpop.f32.mrb[0].mxu0
        %v732 = vadd.f32 %v596, %v731
        %v733 = vpop.f32.mrb[0].mxu0
        %734 = vmatprep.mubr.bf16.mxu0 0
        %735 = vmatmul.mubr.bf16.gmra.mrb[0].mxu0 %v574
        %v736 = vpop.f32.mrb[0].mxu0
        %v737 = vadd.f32 %v596, %v736
        %v738 = vpop.f32.mrb[0].mxu0
        %v739 = vpop.f32.mrb[0].mxu0
        %v740 = vadd.f32 %v596, %v739
        %v741 = vpop.f32.mrb[0].mxu0
        %742 = vdwg.mxu0
        %v743 = vmax.f32 %v681, 0.0
        %v744 = vmax.f32 %v684, 0.0
        %v745 = vmax.f32 %v689, 0.0
        %v746 = vmax.f32 %v692, 0.0
        %v747 = vmax.f32 %v697, 0.0
        %v748 = vmax.f32 %v700, 0.0
        %v749 = vmax.f32 %v705, 0.0
        %v750 = vmax.f32 %v708, 0.0
        %v751 = vmax.f32 %v713, 0.0
        %v752 = vmax.f32 %v716, 0.0
        %v753 = vmax.f32 %v721, 0.0
        %v754 = vmax.f32 %v724, 0.0
        %v755 = vmax.f32 %v729, 0.0
        %v756 = vmax.f32 %v732, 0.0
        %v757 = vmax.f32 %v737, 0.0
        %v758 = vmax.f32 %v740, 0.0
        %v759 = vpack.c.bf16 %v744, %v743
        %v760 = vpack.c.bf16 %v746, %v745
        %v761 = vpack.c.bf16 %v748, %v747
        %v762 = vpack.c.bf16 %v750, %v749
        %v763 = vpack.c.bf16 %v752, %v751
        %v764 = vpack.c.bf16 %v754, %v753
        %v765 = vpack.c.bf16 %v756, %v755
        %v766 = vpack.c.bf16 %v758, %v757
        %v767 = vld [vmem:[%s5] sm:$0xf]
        %v768 = vld [vmem:[%s5 + $0x4] sm:$0xf]
        %v769 = vld [vmem:[%s5 + $0x8] sm:$0xf]
        %v770 = vld [vmem:[%s5 + $0xc] sm:$0xf]
        %v771 = vld [vmem:[%s5 + $0x10] sm:$0xf]
        %v772 = vld [vmem:[%s5 + $0x14] sm:$0xf]
        %v773 = vld [vmem:[%s5 + $0x18] sm:$0xf]
        %v774 = vld [vmem:[%s5 + $0x1c] sm:$0xf]
        %v775 = vld [vmem:[%s5 + $0x20] sm:$0xf]
        %v776 = vld [vmem:[%s5 + $0x24] sm:$0xf]
        %v777 = vld [vmem:[%s5 + $0x28] sm:$0xf]
        %v778 = vld [vmem:[%s5 + $0x2c] sm:$0xf]
        %v779 = vld [vmem:[%s5 + $0x30] sm:$0xf]
        %v780 = vld [vmem:[%s5 + $0x34] sm:$0xf]
        %v781 = vld [vmem:[%s5 + $0x38] sm:$0xf]
        %v782 = vld [vmem:[%s5 + $0x3c] sm:$0xf]
        %v783 = vld [vmem:[%s6] sm:$0x1]
        %v785 = vlaneseq
        %v786 = vshrl.u32 %v785, 7
        %v787 = vsub.s32 0, %v786
        %v788 = vrot.slane %v783, %v787
        %v806 = vunpack.c.l.b16 %v767
        %v807 = vunpack.c.l.b16 %v768
        %v808 = vunpack.c.l.b16 %v769
        %v809 = vunpack.c.l.b16 %v770
        %v810 = vunpack.c.l.b16 %v771
        %v811 = vunpack.c.l.b16 %v772
        %v812 = vunpack.c.l.b16 %v773
        %v813 = vunpack.c.l.b16 %v774
        %v814 = vunpack.c.l.b16 %v775
        %v815 = vunpack.c.l.b16 %v776
        %v816 = vunpack.c.l.b16 %v777
        %v817 = vunpack.c.l.b16 %v778
        %v818 = vunpack.c.l.b16 %v779
        %v819 = vunpack.c.l.b16 %v780
        %v820 = vunpack.c.l.b16 %v781
        %v821 = vunpack.c.l.b16 %v782
        %v822 = vpack.c.b16 %v807, %v806
        %v823 = vpack.c.b16 %v809, %v808
        %v824 = vpack.c.b16 %v811, %v810
        %v825 = vpack.c.b16 %v813, %v812
        %v826 = vpack.c.b16 %v815, %v814
        %v827 = vpack.c.b16 %v817, %v816
        %v828 = vpack.c.b16 %v819, %v818
        %v829 = vpack.c.b16 %v821, %v820
        %838 = vmatprep.subr.bf16.mxu0 0
        %839 = vmatpush1.bf16.msra.mxu0 %v822
        %840 = vmatprep.subr.bf16.mxu0 0
        %841 = vmatpush1.bf16.msra.mxu0 %v823
        %842 = vmatprep.subr.bf16.mxu0 0
        %843 = vmatpush1.bf16.msra.mxu0 %v824
        %844 = vmatprep.subr.bf16.mxu0 0
        %845 = vmatpush1.bf16.msra.mxu0 %v825
        %846 = vmatprep.subr.bf16.mxu0 0
        %847 = vmatpush1.bf16.msra.mxu0 %v826
        %848 = vmatprep.subr.bf16.mxu0 0
        %849 = vmatpush1.bf16.msra.mxu0 %v827
        %850 = vmatprep.subr.bf16.mxu0 0
        %851 = vmatpush1.bf16.msra.mxu0 %v828
        %852 = vmatprep.subr.bf16.mxu0 0
        %853 = vmatpush1.bf16.msra.mxu0 %v829
        %854 = vmatprep.subr.bf16.mxu0 0
        %855 = vmatpush1.bf16.msra.mxu0 0
        %856 = vmatprep.subr.bf16.mxu0 0
        %857 = vmatpush1.bf16.msra.mxu0 0
        %858 = vmatprep.subr.bf16.mxu0 0
        %859 = vmatpush1.bf16.msra.mxu0 0
        %860 = vmatprep.subr.bf16.mxu0 0
        %861 = vmatpush1.bf16.msra.mxu0 0
        %862 = vmatprep.subr.bf16.mxu0 0
        %863 = vmatpush1.bf16.msra.mxu0 0
        %864 = vmatprep.subr.bf16.mxu0 0
        %865 = vmatpush1.bf16.msra.mxu0 0
        %866 = vmatprep.subr.bf16.mxu0 0
        %867 = vmatpush1.bf16.msra.mxu0 0
        %868 = vmatprep.subr.bf16.mxu0 0
        %869 = vmatpush1.bf16.msra.mxu0 0
        %870 = vmatprep.mubr.bf16.mxu0 0
        %871 = vmatmul.mubr.bf16.gmra.mrb[0].mxu0 %v759
        %v872 = vpop.f32.mrb[0].mxu0
        %v873 = vadd.f32 %v788, %v872
        %v874 = vpop.f32.mrb[0].mxu0
        %v875 = vpop.f32.mrb[0].mxu0
        %v876 = vadd.f32 %v788, %v875
        %v877 = vpop.f32.mrb[0].mxu0
        %878 = vmatprep.mubr.bf16.mxu0 0
        %879 = vmatmul.mubr.bf16.gmra.mrb[0].mxu0 %v760
        %v880 = vpop.f32.mrb[0].mxu0
        %v881 = vadd.f32 %v788, %v880
        %v882 = vpop.f32.mrb[0].mxu0
        %v883 = vpop.f32.mrb[0].mxu0
        %v884 = vadd.f32 %v788, %v883
        %v885 = vpop.f32.mrb[0].mxu0
        %886 = vmatprep.mubr.bf16.mxu0 0
        %887 = vmatmul.mubr.bf16.gmra.mrb[0].mxu0 %v761
        %v888 = vpop.f32.mrb[0].mxu0
        %v889 = vadd.f32 %v788, %v888
        %v890 = vpop.f32.mrb[0].mxu0
        %v891 = vpop.f32.mrb[0].mxu0
        %v892 = vadd.f32 %v788, %v891
        %v893 = vpop.f32.mrb[0].mxu0
        %894 = vmatprep.mubr.bf16.mxu0 0
        %895 = vmatmul.mubr.bf16.gmra.mrb[0].mxu0 %v762
        %v896 = vpop.f32.mrb[0].mxu0
        %v897 = vadd.f32 %v788, %v896
        %v898 = vpop.f32.mrb[0].mxu0
        %v899 = vpop.f32.mrb[0].mxu0
        %v900 = vadd.f32 %v788, %v899
        %v901 = vpop.f32.mrb[0].mxu0
        %902 = vmatprep.mubr.bf16.mxu0 0
        %903 = vmatmul.mubr.bf16.gmra.mrb[0].mxu0 %v763
        %v904 = vpop.f32.mrb[0].mxu0
        %v905 = vadd.f32 %v788, %v904
        %v906 = vpop.f32.mrb[0].mxu0
        %v907 = vpop.f32.mrb[0].mxu0
        %v908 = vadd.f32 %v788, %v907
        %v909 = vpop.f32.mrb[0].mxu0
        %910 = vmatprep.mubr.bf16.mxu0 0
        %911 = vmatmul.mubr.bf16.gmra.mrb[0].mxu0 %v764
        %v912 = vpop.f32.mrb[0].mxu0
        %v913 = vadd.f32 %v788, %v912
        %v914 = vpop.f32.mrb[0].mxu0
        %v915 = vpop.f32.mrb[0].mxu0
        %v916 = vadd.f32 %v788, %v915
        %v917 = vpop.f32.mrb[0].mxu0
        %918 = vmatprep.mubr.bf16.mxu0 0
        %919 = vmatmul.mubr.bf16.gmra.mrb[0].mxu0 %v765
        %v920 = vpop.f32.mrb[0].mxu0
        %v921 = vadd.f32 %v788, %v920
        %v922 = vpop.f32.mrb[0].mxu0
        %v923 = vpop.f32.mrb[0].mxu0
        %v924 = vadd.f32 %v788, %v923
        %v925 = vpop.f32.mrb[0].mxu0
        %926 = vmatprep.mubr.bf16.mxu0 0
        %927 = vmatmul.mubr.bf16.gmra.mrb[0].mxu0 %v766
        %v928 = vpop.f32.mrb[0].mxu0
        %v929 = vadd.f32 %v788, %v928
        %v930 = vpop.f32.mrb[0].mxu0
        %v931 = vpop.f32.mrb[0].mxu0
        %v932 = vadd.f32 %v788, %v931
        %v933 = vpop.f32.mrb[0].mxu0
        %934 = vdwg.mxu0
        %v935 = vmax.f32 %v873, 0.0
        %v936 = vmax.f32 %v876, 0.0
        %v937 = vmax.f32 %v881, 0.0
        %v938 = vmax.f32 %v884, 0.0
        %v939 = vmax.f32 %v889, 0.0
        %v940 = vmax.f32 %v892, 0.0
        %v941 = vmax.f32 %v897, 0.0
        %v942 = vmax.f32 %v900, 0.0
        %v943 = vmax.f32 %v905, 0.0
        %v944 = vmax.f32 %v908, 0.0
        %v945 = vmax.f32 %v913, 0.0
        %v946 = vmax.f32 %v916, 0.0
        %v947 = vmax.f32 %v921, 0.0
        %v948 = vmax.f32 %v924, 0.0
        %v949 = vmax.f32 %v929, 0.0
        %v950 = vmax.f32 %v932, 0.0
        %v951 = vpack.c.bf16 %v936, %v935
        %v952 = vpack.c.bf16 %v938, %v937
        %v953 = vpack.c.bf16 %v940, %v939
        %v954 = vpack.c.bf16 %v942, %v941
        %v955 = vpack.c.bf16 %v944, %v943
        %v956 = vpack.c.bf16 %v946, %v945
        %v957 = vpack.c.bf16 %v948, %v947
        %v958 = vpack.c.bf16 %v950, %v949
        %v959 = vld [vmem:[#allocation2] sm:$0xf]
        %v960 = vld [vmem:[#allocation2 + $0x4] sm:$0xf]
        %v961 = vld [vmem:[#allocation2 + $0x8] sm:$0xf]
        %v962 = vld [vmem:[#allocation2 + $0xc] sm:$0xf]
        %v963 = vld [vmem:[#allocation2 + $0x10] sm:$0xf]
        %v964 = vld [vmem:[#allocation2 + $0x14] sm:$0xf]
        %v965 = vld [vmem:[#allocation2 + $0x18] sm:$0xf]
        %v966 = vld [vmem:[#allocation2 + $0x1c] sm:$0xf]
        %v967 = vld [vmem:[#allocation2 + $0x20] sm:$0xf]
        %v968 = vld [vmem:[#allocation2 + $0x24] sm:$0xf]
        %v969 = vld [vmem:[#allocation2 + $0x28] sm:$0xf]
        %v970 = vld [vmem:[#allocation2 + $0x2c] sm:$0xf]
        %v971 = vld [vmem:[#allocation2 + $0x30] sm:$0xf]
        %v972 = vld [vmem:[#allocation2 + $0x34] sm:$0xf]
        %v973 = vld [vmem:[#allocation2 + $0x38] sm:$0xf]
        %v974 = vld [vmem:[#allocation2 + $0x3c] sm:$0xf]
        %v975 = vld [vmem:[%s8] sm:$0x1]
        %v977 = vlaneseq
        %v978 = vshrl.u32 %v977, 7
        %v979 = vsub.s32 0, %v978
        %v980 = vrot.slane %v975, %v979
        %v998 = vunpack.c.l.b16 %v959
        %v999 = vunpack.c.l.b16 %v960
        %v1000 = vunpack.c.l.b16 %v961
        %v1001 = vunpack.c.l.b16 %v962
        %v1002 = vunpack.c.l.b16 %v963
        %v1003 = vunpack.c.l.b16 %v964
        %v1004 = vunpack.c.l.b16 %v965
        %v1005 = vunpack.c.l.b16 %v966
        %v1006 = vunpack.c.l.b16 %v967
        %v1007 = vunpack.c.l.b16 %v968
        %v1008 = vunpack.c.l.b16 %v969
        %v1009 = vunpack.c.l.b16 %v970
        %v1010 = vunpack.c.l.b16 %v971
        %v1011 = vunpack.c.l.b16 %v972
        %v1012 = vunpack.c.l.b16 %v973
        %v1013 = vunpack.c.l.b16 %v974
        %v1014 = vpack.c.b16 %v999, %v998
        %v1015 = vpack.c.b16 %v1001, %v1000
        %v1016 = vpack.c.b16 %v1003, %v1002
        %v1017 = vpack.c.b16 %v1005, %v1004
        %v1018 = vpack.c.b16 %v1007, %v1006
        %v1019 = vpack.c.b16 %v1009, %v1008
        %v1020 = vpack.c.b16 %v1011, %v1010
        %v1021 = vpack.c.b16 %v1013, %v1012
        %1030 = vmatprep.subr.bf16.mxu0 0
        %1031 = vmatpush1.bf16.msra.mxu0 %v1014
        %1032 = vmatprep.subr.bf16.mxu0 0
        %1033 = vmatpush1.bf16.msra.mxu0 %v1015
        %1034 = vmatprep.subr.bf16.mxu0 0
        %1035 = vmatpush1.bf16.msra.mxu0 %v1016
        %1036 = vmatprep.subr.bf16.mxu0 0
        %1037 = vmatpush1.bf16.msra.mxu0 %v1017
        %1038 = vmatprep.subr.bf16.mxu0 0
        %1039 = vmatpush1.bf16.msra.mxu0 %v1018
        %1040 = vmatprep.subr.bf16.mxu0 0
        %1041 = vmatpush1.bf16.msra.mxu0 %v1019
        %1042 = vmatprep.subr.bf16.mxu0 0
        %1043 = vmatpush1.bf16.msra.mxu0 %v1020
        %1044 = vmatprep.subr.bf16.mxu0 0
        %1045 = vmatpush1.bf16.msra.mxu0 %v1021
        %1046 = vmatprep.subr.bf16.mxu0 0
        %1047 = vmatpush1.bf16.msra.mxu0 0
        %1048 = vmatprep.subr.bf16.mxu0 0
        %1049 = vmatpush1.bf16.msra.mxu0 0
        %1050 = vmatprep.subr.bf16.mxu0 0
        %1051 = vmatpush1.bf16.msra.mxu0 0
        %1052 = vmatprep.subr.bf16.mxu0 0
        %1053 = vmatpush1.bf16.msra.mxu0 0
        %1054 = vmatprep.subr.bf16.mxu0 0
        %1055 = vmatpush1.bf16.msra.mxu0 0
        %1056 = vmatprep.subr.bf16.mxu0 0
        %1057 = vmatpush1.bf16.msra.mxu0 0
        %1058 = vmatprep.subr.bf16.mxu0 0
        %1059 = vmatpush1.bf16.msra.mxu0 0
        %1060 = vmatprep.subr.bf16.mxu0 0
        %1061 = vmatpush1.bf16.msra.mxu0 0
        %1062 = vmatprep.mubr.bf16.mxu0 0
        %1063 = vmatmul.mubr.bf16.gmra.mrb[0].mxu0 %v951
        %v1064 = vpop.f32.mrb[0].mxu0
        %v1065 = vadd.f32 %v980, %v1064
        %v1066 = vpop.f32.mrb[0].mxu0
        %v1067 = vpop.f32.mrb[0].mxu0
        %v1068 = vadd.f32 %v980, %v1067
        %v1069 = vpop.f32.mrb[0].mxu0
        %1070 = vmatprep.mubr.bf16.mxu0 0
        %1071 = vmatmul.mubr.bf16.gmra.mrb[0].mxu0 %v952
        %v1072 = vpop.f32.mrb[0].mxu0
        %v1073 = vadd.f32 %v980, %v1072
        %v1074 = vpop.f32.mrb[0].mxu0
        %v1075 = vpop.f32.mrb[0].mxu0
        %v1076 = vadd.f32 %v980, %v1075
        %v1077 = vpop.f32.mrb[0].mxu0
        %1078 = vmatprep.mubr.bf16.mxu0 0
        %1079 = vmatmul.mubr.bf16.gmra.mrb[0].mxu0 %v953
        %v1080 = vpop.f32.mrb[0].mxu0
        %v1081 = vadd.f32 %v980, %v1080
        %v1082 = vpop.f32.mrb[0].mxu0
        %v1083 = vpop.f32.mrb[0].mxu0
        %v1084 = vadd.f32 %v980, %v1083
        %v1085 = vpop.f32.mrb[0].mxu0
        %1086 = vmatprep.mubr.bf16.mxu0 0
        %1087 = vmatmul.mubr.bf16.gmra.mrb[0].mxu0 %v954
        %v1088 = vpop.f32.mrb[0].mxu0
        %v1089 = vadd.f32 %v980, %v1088
        %v1090 = vpop.f32.mrb[0].mxu0
        %v1091 = vpop.f32.mrb[0].mxu0
        %v1092 = vadd.f32 %v980, %v1091
        %v1093 = vpop.f32.mrb[0].mxu0
        %1094 = vmatprep.mubr.bf16.mxu0 0
        %1095 = vmatmul.mubr.bf16.gmra.mrb[0].mxu0 %v955
        %v1096 = vpop.f32.mrb[0].mxu0
        %v1097 = vadd.f32 %v980, %v1096
        %v1098 = vpop.f32.mrb[0].mxu0
        %v1099 = vpop.f32.mrb[0].mxu0
        %v1100 = vadd.f32 %v980, %v1099
        %v1101 = vpop.f32.mrb[0].mxu0
        %1102 = vmatprep.mubr.bf16.mxu0 0
        %1103 = vmatmul.mubr.bf16.gmra.mrb[0].mxu0 %v956
        %v1104 = vpop.f32.mrb[0].mxu0
        %v1105 = vadd.f32 %v980, %v1104
        %v1106 = vpop.f32.mrb[0].mxu0
        %v1107 = vpop.f32.mrb[0].mxu0
        %v1108 = vadd.f32 %v980, %v1107
        %v1109 = vpop.f32.mrb[0].mxu0
        %1110 = vmatprep.mubr.bf16.mxu0 0
        %1111 = vmatmul.mubr.bf16.gmra.mrb[0].mxu0 %v957
        %v1112 = vpop.f32.mrb[0].mxu0
        %v1113 = vadd.f32 %v980, %v1112
        %v1114 = vpop.f32.mrb[0].mxu0
        %v1115 = vpop.f32.mrb[0].mxu0
        %v1116 = vadd.f32 %v980, %v1115
        %v1117 = vpop.f32.mrb[0].mxu0
        %1118 = vmatprep.mubr.bf16.mxu0 0
        %1119 = vmatmul.mubr.bf16.gmra.mrb[0].mxu0 %v958
        %v1120 = vpop.f32.mrb[0].mxu0
        %v1121 = vadd.f32 %v980, %v1120
        %v1122 = vpop.f32.mrb[0].mxu0
        %v1123 = vpop.f32.mrb[0].mxu0
        %v1124 = vadd.f32 %v980, %v1123
        %v1125 = vpop.f32.mrb[0].mxu0
        %1126 = vdwg.mxu0
        %1127 = vst [vmem:[%s341] sm:$0xff] %v1065
        %1128 = vst [vmem:[%s341 + $0x8] sm:$0xff] %v1068
        %1129 = vst [vmem:[%s341 + $0x10] sm:$0xff] %v1073
        %1130 = vst [vmem:[%s341 + $0x18] sm:$0xff] %v1076
        %1131 = vst [vmem:[%s341 + $0x20] sm:$0xff] %v1081
        %1132 = vst [vmem:[%s341 + $0x28] sm:$0xff] %v1084
        %1133 = vst [vmem:[%s341 + $0x30] sm:$0xff] %v1089
        %1134 = vst [vmem:[%s341 + $0x38] sm:$0xff] %v1092
        %1135 = vst [vmem:[%s341 + $0x40] sm:$0xff] %v1097
        %1136 = vst [vmem:[%s341 + $0x48] sm:$0xff] %v1100
        %1137 = vst [vmem:[%s341 + $0x50] sm:$0xff] %v1105
        %1138 = vst [vmem:[%s341 + $0x58] sm:$0xff] %v1108
        %1139 = vst [vmem:[%s341 + $0x60] sm:$0xff] %v1113
        %1140 = vst [vmem:[%s341 + $0x68] sm:$0xff] %v1116
        %1141 = vst [vmem:[%s341 + $0x70] sm:$0xff] %v1121
        %1142 = vst [vmem:[%s341 + $0x78] sm:$0xff] %v1124
        %s1143 = sand.u32 %s226, 1
        %s1144 = scalar_lea.sflag [#allocation4], %s1143
        %s1145 = sand.u32 %s226, 1
        %s1146 = smul.addr %s1145, 128
        %s1147 = scalar_lea.vmem [#allocation5], %s1146
        // Predicated region
        $region61: #{tpu_custom_call.1} parent=55 // pred_check
          %p1148 = pneg %p236
        $region62: #{tpu_custom_call.1} parent=55 // pred_check_branch
          %1150 = sbr.rel (%p1148) target = $region64
        $region63: #{tpu_custom_call.1} parent=55 // pred_region
          %s1151 = smul.u32 16, %s24
          %s1153 = ssub.s32 2048, 2048
          %1154 = vsyncadd %s1144, %s1153
          %s1155 = smul.addr %s1151, 128
          %s1156 = scalar_lea.hbm %s9, %s1155
          %s1157 = sshll.u32 %s1147, 4
          %s1158 = int_to_ptr.vmem [resolvable:$true] %s1157
          %1163 = dma.vmem_to_hbm [thread:$0]  %s1158, 2048, %s1156, %s1144, 128, 128, 8
        $region64: #{tpu_custom_call.1} parent=55 // pred_fallthru
          _
      $region56: #{tpu_custom_call.1} parent=5 // pred_fallthru
        _
      %p1164 = scmp.le.s32.totalorder 2, %s19
      // Predicated region
      $region65: #{tpu_custom_call.1} parent=5 // pred_check
        %p1165 = pneg %p1164
      $region66: #{tpu_custom_call.1} parent=5 // pred_check_branch
        %1167 = sbr.rel (%p1165) target = $region68
      $region67: #{tpu_custom_call.1} parent=5 // pred_region
        %s1168 = ssub.s32 %s19, 2
        // Predicated region
        $region69: #{tpu_custom_call.1} parent=67 // pred_check
          %p1169 = pneg %p242
        $region70: #{tpu_custom_call.1} parent=67 // pred_check_branch
          %1171 = sbr.rel (%p1169) target = $region72
        $region71: #{tpu_custom_call.1} parent=67 // pred_region
          %s1172 = sand.u32 %s227, 1
          %s1173 = scalar_lea.sflag [#allocation4], %s1172
          %s1174 = sand.u32 %s227, 1
          %s1175 = smul.addr %s1174, 128
          %s1176 = scalar_lea.vmem [#allocation5], %s1175
          %1177 = dma.done %s1173, 2048
        $region72: #{tpu_custom_call.1} parent=67 // pred_fallthru
          _
      $region68: #{tpu_custom_call.1} parent=5 // pred_fallthru
        _
    $region6: #{tpu_custom_call.1} parent=1 // loop_footer
      %s23 = sadd.s32 1, %s19
    $region7: #{tpu_custom_call.1} parent=1 // loop_footer_branch
      %18 = sbr.rel target = $region3
    $region8: #{tpu_custom_call.1} parent=1 // loop_exit
      _
    %1178 = vsyncpa [#allocation3], 1
    %s1179 = scalar_lea.sflag [#allocation3], 1
    %1180 = vsyncpa %s1179, 1
    %1181 = vsyncpa [#allocation4], 1
    %s1182 = scalar_lea.sflag [#allocation4], 1
    %1183 = vsyncpa %s1182, 1

</llo_original>
